<compile_context>
chip_gen: v7x
topology: tpu7x:2x2x1
jax: 0.10.0
libtpu: 0.0.40
codegen_flags: <defaults>
</compile_context>

<pallas_src>
import functools
import math

import jax
import jax.numpy as jnp
from jax.experimental import pallas as pl
from jax.experimental.pallas import tpu as pltpu

HIDDEN = 256
OUT_PAD = 128  # lane-dense output tile; only column 0 is meaningful


def _round_up(x, m):
    return ((x + m - 1) // m) * m


def _pick_tiles(B, tile_b):
    """Choose (tb, n_tiles) so b_pad = tb * n_tiles >= B with little waste,
    and give the 'parallel' batch axis >= 4 steps when the batch is large
    enough (v7x two-TC split + pipelining)."""
    tb_cap = max(8, _round_up(min(int(tile_b), 512), 8))
    n_tiles = pl.cdiv(B, tb_cap)
    if B >= 4 * 32:
        n_tiles = max(n_tiles, 4)
    tb = _round_up(pl.cdiv(B, n_tiles), 8)
    return tb, n_tiles


def _deepset_critic_kernel(og_ref, ga_ref,
                           w1og_ref, w1ga_ref, b1_ref,
                           w2_ref, b2_ref, w3_ref, b3_ref,
                           w4_ref, b4_ref, wq_ref, bq_ref,
                           out_ref, *, agg, pool_scale):
    """og_ref: [n_obj, tb, og_dim] per-token (object+goal) features.
    ga_ref: [tb, ga_dim] batch-constant (gripper + scaled action) features.
    Weights are [in, out]; biases [1, out] f32; wq_ref is [1, HIDDEN] f32,
    bq_ref is [1, 1] f32.  out_ref: [tb, OUT_PAD] f32 (q in column 0)."""
    n_obj, tb, og_dim = og_ref.shape
    hidden = w2_ref.shape[0]
    cdt = w2_ref.dtype  # MXU compute dtype (bf16 or f32); accumulation is f32

    # fc1, batch-constant contribution (incl. bias): [tb, H] f32.
    t = jnp.dot(ga_ref[...], w1ga_ref[...],
                preferred_element_type=jnp.float32) + b1_ref[...]

    # fc1, per-token contribution.  Collapsing the leading (n_obj, tb) dims is
    # layout-preserving because tb is a multiple of 8.
    og = og_ref[...].reshape(n_obj * tb, og_dim)
    h = jnp.dot(og, w1og_ref[...], preferred_element_type=jnp.float32)
    h = h.reshape(n_obj, tb, hidden) + t[None, :, :]
    h = jnp.maximum(h, 0.0).astype(cdt).reshape(n_obj * tb, hidden)

    # fc2 / fc3 (bf16 cast fused into the ReLU; fc3 output kept f32 for pooling)
    h = jnp.dot(h, w2_ref[...], preferred_element_type=jnp.float32) + b2_ref[...]
    h = jnp.maximum(h, 0.0).astype(cdt)
    h = jnp.dot(h, w3_ref[...], preferred_element_type=jnp.float32) + b3_ref[...]
    h = jnp.maximum(h, 0.0)

    # pooling over the (leading) object axis — pure VPU work, no MXU, no XLU.
    h3 = h.reshape(n_obj, tb, hidden)
    if agg == 'max':
        pooled = jnp.max(h3, axis=0)
    else:  # 'mean' or 'sum' (scale folds the mean)
        pooled = jnp.sum(h3, axis=0) * pool_scale
    # pooled stays f32; only the fc4 LHS is cast.

    # fc4 + ReLU
    h4 = jnp.dot(pooled.astype(cdt), w4_ref[...],
                 preferred_element_type=jnp.float32) + b4_ref[...]
    h4 = jnp.maximum(h4, 0.0)  # [tb, H] f32

    # q head on VPU + XLU (an MXU matmul against a 128-wide zero-padded wq
    # would be 127/128 multiplies by zero).  Write lane-dense [tb, OUT_PAD].
    qv = jnp.sum(h4 * wq_ref[...], axis=-1, keepdims=True) + bq_ref[...]  # [tb,1]
    lane = jax.lax.broadcasted_iota(jnp.int32, (tb, out_ref.shape[-1]), 1)
    out_ref[...] = jnp.where(lane == 0, qv, 0.0).astype(out_ref.dtype)


def init_params(key, token_dim):
    """nn.Linear-style init U(-1/sqrt(fan_in), 1/sqrt(fan_in)); weights stored
    as [in, out] (transposed vs. PyTorch)."""
    dims = [(token_dim, HIDDEN), (HIDDEN, HIDDEN), (HIDDEN, HIDDEN),
            (HIDDEN, HIDDEN), (HIDDEN, 1)]
    params = []
    for fan_in, fan_out in dims:
        key, kw, kb = jax.random.split(key, 3)
        bound = 1.0 / math.sqrt(fan_in)
        w = jax.random.uniform(kw, (fan_in, fan_out), jnp.float32, -bound, bound)
        b = jax.random.uniform(kb, (1, fan_out), jnp.float32, -bound, bound)
        params.extend([w, b])
    return tuple(params)


def prepare_params(params, env_params, compute_dtype=jnp.bfloat16):
    """One-time prep: fold 1/max_action into the action rows of W1, split W1
    into the batch-constant (gripper, action) part and the per-token
    (object, goal) part, reshape the q head for the VPU path, cast weights to
    the compute dtype (biases / q head stay f32)."""
    w1, b1, w2, b2, w3, b3, w4, b4, wq, bq = params
    gripper = env_params['gripper']
    obj_dim = env_params['object']
    goal_dim = env_params['goal']
    action_dim = env_params['action']
    max_action = env_params['action_max']

    # token layout (rows of W1): [gripper | object | goal | action]
    w1 = w1.at[-action_dim:, :].multiply(1.0 / max_action)
    w1_grip = w1[:gripper]
    w1_og = w1[gripper:gripper + obj_dim + goal_dim]
    w1_act = w1[gripper + obj_dim + goal_dim:]
    w1_ga = jnp.concatenate((w1_grip, w1_act), axis=0)

    f32 = jnp.float32
    return (w1_og.astype(compute_dtype), w1_ga.astype(compute_dtype),
            b1.astype(f32),
            w2.astype(compute_dtype), b2.astype(f32),
            w3.astype(compute_dtype), b3.astype(f32),
            w4.astype(compute_dtype), b4.astype(f32),
            wq.reshape(1, -1).astype(f32),   # [1, HIDDEN] row for VPU q head
            bq.reshape(1, 1).astype(f32))


def critic_deepset_forward(grip, obj, g, actions, prep, *, agg='mean',
                           tile_b=128):
    """critic_deepset_big.forward for 2-D batch inputs.

    grip:    [B, gripper]
    obj:     [B, n_obj, obj_dim]
    g:       [B, n_obj, goal_dim]
    actions: [B, action_dim]   (scaling by 1/max_action is folded into W1)
    Returns [B, 1] f32.
    """
    if agg not in ('mean', 'sum', 'max'):
        raise ValueError(f'Unrecognized aggregation function {agg}')
    (w1_og, w1_ga, b1, w2, b2, w3, b3, w4, b4, wq_row, bq) = prep
    cdt = w2.dtype
    B = grip.shape[0]
    n_obj = obj.shape[-2]
    og_dim = obj.shape[-1] + g.shape[-1]
    ga_dim = grip.shape[-1] + actions.shape[-1]
    hidden = w2.shape[0]

    tb, n_tiles = _pick_tiles(B, tile_b)
    b_pad = tb * n_tiles

    # --- glue ---------------------------------------------------------------
    # Per-token features, [n_obj, b_pad, og_dim] so the kernel can collapse the
    # leading dims and pool over axis 0.  No feature-dim padding, no grip/act
    # replication over the object axis.
    og = jnp.concatenate((obj, g), axis=-1)            # [B, n_obj, og_dim]
    og = jnp.swapaxes(og, 0, 1)                        # [n_obj, B, og_dim]
    og = jnp.pad(og, ((0, 0), (0, b_pad - B), (0, 0))).astype(cdt)

    # Batch-constant features (gripper, action); 1/max_action is in W1_ga.
    ga = jnp.concatenate((grip, actions), axis=-1)     # [B, ga_dim]
    ga = jnp.pad(ga, ((0, b_pad - B), (0, 0))).astype(cdt)

    pool_scale = (1.0 / n_obj) if agg == 'mean' else 1.0
    kernel = functools.partial(_deepset_critic_kernel, agg=agg,
                               pool_scale=float(pool_scale))

    inputs = (og, ga, w1_og, w1_ga, b1, w2, b2, w3, b3, w4, b4, wq_row, bq)
    bytes_accessed = int(sum(a.size * a.dtype.itemsize for a in inputs)
                         + b_pad * OUT_PAD * 4)
    rows = b_pad * n_obj
    flops = int(2 * rows * og_dim * hidden          # fc1 per-token part
                + 2 * b_pad * ga_dim * hidden       # fc1 batch-constant part
                + 2 * 2 * rows * hidden * hidden    # fc2, fc3
                + 2 * b_pad * hidden * hidden       # fc4
                + 2 * b_pad * hidden)               # q head (VPU)

    out = pl.pallas_call(
        kernel,
        out_shape=jax.ShapeDtypeStruct((b_pad, OUT_PAD), jnp.float32),
        grid_spec=pltpu.PrefetchScalarGridSpec(
            num_scalar_prefetch=0,
            grid=(n_tiles,),
            in_specs=[
                # token tiles stream with the grid; weights stay VMEM-resident
                pl.BlockSpec((n_obj, tb, og_dim), lambda i: (0, i, 0)),
                pl.BlockSpec((tb, ga_dim), lambda i: (i, 0)),
                pl.BlockSpec((og_dim, hidden), lambda i: (0, 0)),
                pl.BlockSpec((ga_dim, hidden), lambda i: (0, 0)),
                pl.BlockSpec((1, hidden), lambda i: (0, 0)),
                pl.BlockSpec((hidden, hidden), lambda i: (0, 0)),
                pl.BlockSpec((1, hidden), lambda i: (0, 0)),
                pl.BlockSpec((hidden, hidden), lambda i: (0, 0)),
                pl.BlockSpec((1, hidden), lambda i: (0, 0)),
                pl.BlockSpec((hidden, hidden), lambda i: (0, 0)),
                pl.BlockSpec((1, hidden), lambda i: (0, 0)),
                pl.BlockSpec((1, hidden), lambda i: (0, 0)),
                pl.BlockSpec((1, 1), lambda i: (0, 0)),
            ],
            out_specs=pl.BlockSpec((tb, OUT_PAD), lambda i: (i, 0)),
        ),
        compiler_params=pltpu.CompilerParams(
            dimension_semantics=("parallel",),
            vmem_limit_bytes=32 * 1024 * 1024),
        cost_estimate=pl.CostEstimate(flops=flops, transcendentals=0,
                                      bytes_accessed=bytes_accessed),
    )(*inputs)

    return out[:B, :1]


def reference_forward(grip, obj, g, actions, params, max_action, agg='mean'):
    """Pure-JAX f32 reference mirroring the PyTorch module."""
    B = grip.shape[0]
    n_obj = obj.shape[-2]
    grip_t = jnp.broadcast_to(grip[:, None, :], (B, n_obj, grip.shape[-1]))
    act_t = jnp.broadcast_to(actions[:, None, :], (B, n_obj, actions.shape[-1]))
    x = jnp.concatenate((grip_t, obj, g, act_t / max_action), axis=-1)
    w1, b1, w2, b2, w3, b3, w4, b4, wq, bq = params
    x = jax.nn.relu(x @ w1 + b1)
    x = jax.nn.relu(x @ w2 + b2)
    x = jax.nn.relu(x @ w3 + b3)
    if agg == 'mean':
        x = x.mean(-2)
    elif agg == 'sum':
        x = x.sum(-2)
    elif agg == 'max':
        x = x.max(-2)
    x = jax.nn.relu(x @ w4 + b4)
    return x @ wq + bq


if __name__ == "__main__":
    # env_params: gripper=10, object=15, goal=3, action=4, action_max=2.0
    env = dict(gripper=10, object=15, goal=3, action=4, action_max=2.0)
    token_dim = env['gripper'] + env['object'] + env['goal'] + env['action']  # 32

    key = jax.random.PRNGKey(0)
    kp, k1, k2, k3, k4, k5, k6, k7, k8 = jax.random.split(key, 9)
    params = init_params(kp, token_dim)

    # --- case 1: small batch, single grid tile, f32 compute (tight check) ---
    B, n_obj = 6, 3
    grip = jax.random.normal(k1, (B, env['gripper']), jnp.float32)
    obj = jax.random.normal(k2, (B, n_obj, env['object']), jnp.float32)
    g = jax.random.normal(k3, (B, n_obj, env['goal']), jnp.float32)
    actions = jax.random.normal(k4, (B, env['action']), jnp.float32)

    prep_f32 = prepare_params(params, env, jnp.float32)
    q = critic_deepset_forward(grip, obj, g, actions, prep_f32, agg='mean')
    q = jax.block_until_ready(q)
    q_ref = reference_forward(grip, obj, g, actions, params, env['action_max'],
                              'mean')
    assert q.shape == (B, 1)
    assert jnp.allclose(q, q_ref, atol=2e-4, rtol=2e-4), (q, q_ref)

    # --- case 1b: max aggregation (now supported by the VPU pooling path) ---
    q_max = critic_deepset_forward(grip, obj, g, actions, prep_f32, agg='max')
    q_max = jax.block_until_ready(q_max)
    q_max_ref = reference_forward(grip, obj, g, actions, params,
                                  env['action_max'], 'max')
    assert jnp.allclose(q_max, q_max_ref, atol=2e-4, rtol=2e-4), (q_max, q_max_ref)

    # --- case 2: multi-tile grid + batch padding, bf16 compute --------------
    B2, n_obj2 = 48, 6
    grip2 = jax.random.normal(k5, (B2, env['gripper']), jnp.float32)
    obj2 = jax.random.normal(k6, (B2, n_obj2, env['object']), jnp.float32)
    g2 = jax.random.normal(k7, (B2, n_obj2, env['goal']), jnp.float32)
    actions2 = jax.random.normal(k8, (B2, env['action']), jnp.float32)

    prep_bf16 = prepare_params(params, env, jnp.bfloat16)
    q2 = critic_deepset_forward(grip2, obj2, g2, actions2, prep_bf16,
                                agg='mean', tile_b=16)
    q2 = jax.block_until_ready(q2)
    q2_ref = reference_forward(grip2, obj2, g2, actions2, params,
                               env['action_max'], 'mean')
    assert q2.shape == (B2, 1)
    # bf16 inputs with f32 accumulation: relaxed tolerance vs. the f32 reference
    assert jnp.allclose(q2, q2_ref, atol=5e-2, rtol=5e-2), (q2, q2_ref)

    print("KERNEL_OK")
</pallas_src>

<mosaic_0001>
module attributes {stable_mosaic.version = 11 : i64} {
  func.func @_deepset_critic_kernel(%arg0: i32, %arg1: memref<3x8x18xf32, #tpu.memory_space<vmem>>, %arg2: memref<8x14xf32, #tpu.memory_space<vmem>>, %arg3: memref<18x256xf32, #tpu.memory_space<vmem>>, %arg4: memref<14x256xf32, #tpu.memory_space<vmem>>, %arg5: memref<1x256xf32, #tpu.memory_space<vmem>>, %arg6: memref<256x256xf32, #tpu.memory_space<vmem>>, %arg7: memref<1x256xf32, #tpu.memory_space<vmem>>, %arg8: memref<256x256xf32, #tpu.memory_space<vmem>>, %arg9: memref<1x256xf32, #tpu.memory_space<vmem>>, %arg10: memref<256x256xf32, #tpu.memory_space<vmem>>, %arg11: memref<1x256xf32, #tpu.memory_space<vmem>>, %arg12: memref<1x256xf32, #tpu.memory_space<vmem>>, %arg13: memref<1x1xf32, #tpu.memory_space<vmem>>, %arg14: memref<8x128xf32, #tpu.memory_space<vmem>>) attributes {dimension_semantics = [#tpu.dimension_semantics<parallel>], iteration_bounds = array<i64: 1>, scalar_prefetch = 0 : i64, scratch_operands = 0 : i64, tpu.core_type = #tpu.core_type<tc>, window_params = [{transform_indices = @transform_0, window_bounds = array<i64: 3, 8, 18>}, {transform_indices = @transform_1, window_bounds = array<i64: 8, 14>}, {pipeline_mode = #tpu.pipeline_mode<synchronous>, transform_indices = @transform_2, window_bounds = array<i64: 18, 256>}, {pipeline_mode = #tpu.pipeline_mode<synchronous>, transform_indices = @transform_3, window_bounds = array<i64: 14, 256>}, {pipeline_mode = #tpu.pipeline_mode<synchronous>, transform_indices = @transform_4, window_bounds = array<i64: 1, 256>}, {pipeline_mode = #tpu.pipeline_mode<synchronous>, transform_indices = @transform_5, window_bounds = array<i64: 256, 256>}, {pipeline_mode = #tpu.pipeline_mode<synchronous>, transform_indices = @transform_6, window_bounds = array<i64: 1, 256>}, {pipeline_mode = #tpu.pipeline_mode<synchronous>, transform_indices = @transform_7, window_bounds = array<i64: 256, 256>}, {pipeline_mode = #tpu.pipeline_mode<synchronous>, transform_indices = @transform_8, window_bounds = array<i64: 1, 256>}, {pipeline_mode = #tpu.pipeline_mode<synchronous>, transform_indices = @transform_9, window_bounds = array<i64: 256, 256>}, {pipeline_mode = #tpu.pipeline_mode<synchronous>, transform_indices = @transform_10, window_bounds = array<i64: 1, 256>}, {pipeline_mode = #tpu.pipeline_mode<synchronous>, transform_indices = @transform_11, window_bounds = array<i64: 1, 256>}, {pipeline_mode = #tpu.pipeline_mode<synchronous>, transform_indices = @transform_12, window_bounds = array<i64: 1, 1>}, {transform_indices = @transform_13, window_bounds = array<i64: 8, 128>}]} {
    %c0 = arith.constant 0 : index
    %c0_0 = arith.constant 0 : index
    %0 = vector.load %arg2[%c0, %c0_0] : memref<8x14xf32, #tpu.memory_space<vmem>>, vector<8x14xf32>
    %c0_1 = arith.constant 0 : index
    %c0_2 = arith.constant 0 : index
    %1 = vector.load %arg4[%c0_1, %c0_2] : memref<14x256xf32, #tpu.memory_space<vmem>>, vector<14x256xf32>
    %cst = arith.constant dense<0.000000e+00> : vector<8x256xf32>
    %2 = tpu.matmul %0, %1, %cst {dimension_numbers = #tpu.dot_dimension_numbers<[1], [0], [0], [1], [0, 0, 1, 1], [], []>} : vector<8x14xf32>, vector<14x256xf32>, vector<8x256xf32> -> vector<8x256xf32>
    %c0_3 = arith.constant 0 : index
    %c0_4 = arith.constant 0 : index
    %3 = vector.load %arg5[%c0_3, %c0_4] : memref<1x256xf32, #tpu.memory_space<vmem>>, vector<1x256xf32>
    %4 = vector.broadcast %3 : vector<1x256xf32> to vector<8x256xf32>
    %5 = arith.addf %2, %4 : vector<8x256xf32>
    %c0_5 = arith.constant 0 : index
    %c0_6 = arith.constant 0 : index
    %c0_7 = arith.constant 0 : index
    %6 = vector.load %arg1[%c0_5, %c0_6, %c0_7] : memref<3x8x18xf32, #tpu.memory_space<vmem>>, vector<3x8x18xf32>
    %7 = vector.shape_cast %6 : vector<3x8x18xf32> to vector<24x18xf32>
    %c0_8 = arith.constant 0 : index
    %c0_9 = arith.constant 0 : index
    %8 = vector.load %arg3[%c0_8, %c0_9] : memref<18x256xf32, #tpu.memory_space<vmem>>, vector<18x256xf32>
    %cst_10 = arith.constant dense<0.000000e+00> : vector<24x256xf32>
    %9 = tpu.matmul %7, %8, %cst_10 {dimension_numbers = #tpu.dot_dimension_numbers<[1], [0], [0], [1], [0, 0, 1, 1], [], []>} : vector<24x18xf32>, vector<18x256xf32>, vector<24x256xf32> -> vector<24x256xf32>
    %10 = vector.shape_cast %9 : vector<24x256xf32> to vector<3x8x256xf32>
    %11 = vector.shape_cast %5 : vector<8x256xf32> to vector<1x8x256xf32>
    %12 = vector.broadcast %11 : vector<1x8x256xf32> to vector<3x8x256xf32>
    %13 = arith.addf %10, %12 : vector<3x8x256xf32>
    %cst_11 = arith.constant 0.000000e+00 : f32
    %14 = vector.broadcast %cst_11 : f32 to vector<3x8x256xf32>
    %15 = arith.maximumf %13, %14 : vector<3x8x256xf32>
    %16 = vector.shape_cast %15 : vector<3x8x256xf32> to vector<24x256xf32>
    %c0_12 = arith.constant 0 : index
    %c0_13 = arith.constant 0 : index
    %17 = vector.load %arg6[%c0_12, %c0_13] : memref<256x256xf32, #tpu.memory_space<vmem>>, vector<256x256xf32>
    %cst_14 = arith.constant dense<0.000000e+00> : vector<24x256xf32>
    %18 = tpu.matmul %16, %17, %cst_14 {dimension_numbers = #tpu.dot_dimension_numbers<[1], [0], [0], [1], [0, 0, 1, 1], [], []>} : vector<24x256xf32>, vector<256x256xf32>, vector<24x256xf32> -> vector<24x256xf32>
    %c0_15 = arith.constant 0 : index
    %c0_16 = arith.constant 0 : index
    %19 = vector.load %arg7[%c0_15, %c0_16] : memref<1x256xf32, #tpu.memory_space<vmem>>, vector<1x256xf32>
    %20 = vector.broadcast %19 : vector<1x256xf32> to vector<24x256xf32>
    %21 = arith.addf %18, %20 : vector<24x256xf32>
    %cst_17 = arith.constant 0.000000e+00 : f32
    %22 = vector.broadcast %cst_17 : f32 to vector<24x256xf32>
    %23 = arith.maximumf %21, %22 : vector<24x256xf32>
    %c0_18 = arith.constant 0 : index
    %c0_19 = arith.constant 0 : index
    %24 = vector.load %arg8[%c0_18, %c0_19] : memref<256x256xf32, #tpu.memory_space<vmem>>, vector<256x256xf32>
    %cst_20 = arith.constant dense<0.000000e+00> : vector<24x256xf32>
    %25 = tpu.matmul %23, %24, %cst_20 {dimension_numbers = #tpu.dot_dimension_numbers<[1], [0], [0], [1], [0, 0, 1, 1], [], []>} : vector<24x256xf32>, vector<256x256xf32>, vector<24x256xf32> -> vector<24x256xf32>
    %c0_21 = arith.constant 0 : index
    %c0_22 = arith.constant 0 : index
    %26 = vector.load %arg9[%c0_21, %c0_22] : memref<1x256xf32, #tpu.memory_space<vmem>>, vector<1x256xf32>
    %27 = vector.broadcast %26 : vector<1x256xf32> to vector<24x256xf32>
    %28 = arith.addf %25, %27 : vector<24x256xf32>
    %cst_23 = arith.constant 0.000000e+00 : f32
    %29 = vector.broadcast %cst_23 : f32 to vector<24x256xf32>
    %30 = arith.maximumf %28, %29 : vector<24x256xf32>
    %31 = vector.shape_cast %30 : vector<24x256xf32> to vector<3x8x256xf32>
    %cst_24 = arith.constant dense<0.000000e+00> : vector<8x256xf32>
    %32 = vector.multi_reduction <add>, %31, %cst_24 [0] : vector<3x8x256xf32> to vector<8x256xf32>
    %cst_25 = arith.constant 0.333333343 : f32
    %33 = vector.broadcast %cst_25 : f32 to vector<8x256xf32>
    %34 = arith.mulf %32, %33 : vector<8x256xf32>
    %c0_26 = arith.constant 0 : index
    %c0_27 = arith.constant 0 : index
    %35 = vector.load %arg10[%c0_26, %c0_27] : memref<256x256xf32, #tpu.memory_space<vmem>>, vector<256x256xf32>
    %cst_28 = arith.constant dense<0.000000e+00> : vector<8x256xf32>
    %36 = tpu.matmul %34, %35, %cst_28 {dimension_numbers = #tpu.dot_dimension_numbers<[1], [0], [0], [1], [0, 0, 1, 1], [], []>} : vector<8x256xf32>, vector<256x256xf32>, vector<8x256xf32> -> vector<8x256xf32>
    %c0_29 = arith.constant 0 : index
    %c0_30 = arith.constant 0 : index
    %37 = vector.load %arg11[%c0_29, %c0_30] : memref<1x256xf32, #tpu.memory_space<vmem>>, vector<1x256xf32>
    %38 = vector.broadcast %37 : vector<1x256xf32> to vector<8x256xf32>
    %39 = arith.addf %36, %38 : vector<8x256xf32>
    %cst_31 = arith.constant 0.000000e+00 : f32
    %40 = vector.broadcast %cst_31 : f32 to vector<8x256xf32>
    %41 = arith.maximumf %39, %40 : vector<8x256xf32>
    %c0_32 = arith.constant 0 : index
    %c0_33 = arith.constant 0 : index
    %42 = vector.load %arg12[%c0_32, %c0_33] : memref<1x256xf32, #tpu.memory_space<vmem>>, vector<1x256xf32>
    %43 = vector.broadcast %42 : vector<1x256xf32> to vector<8x256xf32>
    %44 = arith.mulf %41, %43 : vector<8x256xf32>
    %cst_34 = arith.constant dense<0.000000e+00> : vector<8xf32>
    %45 = vector.multi_reduction <add>, %44, %cst_34 [1] : vector<8x256xf32> to vector<8xf32>
    %46 = vector.shape_cast %45 : vector<8xf32> to vector<8x1xf32>
    %c0_35 = arith.constant 0 : index
    %c0_36 = arith.constant 0 : index
    %47 = vector.load %arg13[%c0_35, %c0_36] : memref<1x1xf32, #tpu.memory_space<vmem>>, vector<1x1xf32>
    %48 = vector.broadcast %47 : vector<1x1xf32> to vector<8x1xf32>
    %49 = arith.addf %46, %48 : vector<8x1xf32>
    %50 = tpu.iota {dimensions = array<i32: 1>} : vector<8x128xi32>
    %c0_i32 = arith.constant 0 : i32
    %51 = vector.broadcast %c0_i32 : i32 to vector<8x128xi32>
    %52 = arith.cmpi eq, %50, %51 : vector<8x128xi32>
    %cst_37 = arith.constant 0.000000e+00 : f32
    %53 = vector.shape_cast %49 : vector<8x1xf32> to vector<8x1xf32>
    %54 = vector.broadcast %53 : vector<8x1xf32> to vector<8x128xf32>
    %55 = vector.broadcast %cst_37 : f32 to vector<8x128xf32>
    %56 = arith.select %52, %54, %55 : vector<8x128xi1>, vector<8x128xf32>
    %c0_38 = arith.constant 0 : index
    %c0_39 = arith.constant 0 : index
    %57 = vector.load %arg14[%c0_38, %c0_39] : memref<8x128xf32, #tpu.memory_space<vmem>>, vector<8x128xf32>
    tpu.vector_store %arg14[%c0_38, %c0_39], %56 {strides = array<i32>} : memref<8x128xf32, #tpu.memory_space<vmem>>, vector<8x128xf32>,
    return
  }
  func.func @transform_0(%arg0: i32) -> (i32, i32, i32) {
    %c0_i32 = arith.constant 0 : i32
    %c0_i32_0 = arith.constant 0 : i32
    %c0_i32_1 = arith.constant 0 : i32
    return %c0_i32, %arg0, %c0_i32_0 : i32, i32, i32
  }
  func.func @transform_1(%arg0: i32) -> (i32, i32) {
    %c0_i32 = arith.constant 0 : i32
    %c0_i32_0 = arith.constant 0 : i32
    return %arg0, %c0_i32 : i32, i32
  }
  func.func @transform_2(%arg0: i32) -> (i32, i32) {
    %c0_i32 = arith.constant 0 : i32
    %c0_i32_0 = arith.constant 0 : i32
    %c0_i32_1 = arith.constant 0 : i32
    return %c0_i32, %c0_i32_0 : i32, i32
  }
  func.func @transform_3(%arg0: i32) -> (i32, i32) {
    %c0_i32 = arith.constant 0 : i32
    %c0_i32_0 = arith.constant 0 : i32
    %c0_i32_1 = arith.constant 0 : i32
    return %c0_i32, %c0_i32_0 : i32, i32
  }
  func.func @transform_4(%arg0: i32) -> (i32, i32) {
    %c0_i32 = arith.constant 0 : i32
    %c0_i32_0 = arith.constant 0 : i32
    %c0_i32_1 = arith.constant 0 : i32
    return %c0_i32, %c0_i32_0 : i32, i32
  }
  func.func @transform_5(%arg0: i32) -> (i32, i32) {
    %c0_i32 = arith.constant 0 : i32
    %c0_i32_0 = arith.constant 0 : i32
    %c0_i32_1 = arith.constant 0 : i32
    return %c0_i32, %c0_i32_0 : i32, i32
  }
  func.func @transform_6(%arg0: i32) -> (i32, i32) {
    %c0_i32 = arith.constant 0 : i32
    %c0_i32_0 = arith.constant 0 : i32
    %c0_i32_1 = arith.constant 0 : i32
    return %c0_i32, %c0_i32_0 : i32, i32
  }
  func.func @transform_7(%arg0: i32) -> (i32, i32) {
    %c0_i32 = arith.constant 0 : i32
    %c0_i32_0 = arith.constant 0 : i32
    %c0_i32_1 = arith.constant 0 : i32
    return %c0_i32, %c0_i32_0 : i32, i32
  }
  func.func @transform_8(%arg0: i32) -> (i32, i32) {
    %c0_i32 = arith.constant 0 : i32
    %c0_i32_0 = arith.constant 0 : i32
    %c0_i32_1 = arith.constant 0 : i32
    return %c0_i32, %c0_i32_0 : i32, i32
  }
  func.func @transform_9(%arg0: i32) -> (i32, i32) {
    %c0_i32 = arith.constant 0 : i32
    %c0_i32_0 = arith.constant 0 : i32
    %c0_i32_1 = arith.constant 0 : i32
    return %c0_i32, %c0_i32_0 : i32, i32
  }
  func.func @transform_10(%arg0: i32) -> (i32, i32) {
    %c0_i32 = arith.constant 0 : i32
    %c0_i32_0 = arith.constant 0 : i32
    %c0_i32_1 = arith.constant 0 : i32
    return %c0_i32, %c0_i32_0 : i32, i32
  }
  func.func @transform_11(%arg0: i32) -> (i32, i32) {
    %c0_i32 = arith.constant 0 : i32
    %c0_i32_0 = arith.constant 0 : i32
    %c0_i32_1 = arith.constant 0 : i32
    return %c0_i32, %c0_i32_0 : i32, i32
  }
  func.func @transform_12(%arg0: i32) -> (i32, i32) {
    %c0_i32 = arith.constant 0 : i32
    %c0_i32_0 = arith.constant 0 : i32
    %c0_i32_1 = arith.constant 0 : i32
    return %c0_i32, %c0_i32_0 : i32, i32
  }
  func.func @transform_13(%arg0: i32) -> (i32, i32) {
    %c0_i32 = arith.constant 0 : i32
    %c0_i32_0 = arith.constant 0 : i32
    return %arg0, %c0_i32 : i32, i32
  }
}

</mosaic_0001>

<llo_original>
// kernel: tpu_custom_call.1
$region0: #{tpu_custom_call.1}
  #allocation0 [shape = 'u32[]', space=smem, size = 0x4, offset = 0x4, fixed_abs, tag = 'smem constant byte address 0x4 - core index']
  #allocation1 [shape = 'u32[144,128]{1,0:T(1,128)}', space=vmem, size = 0x12000, scoped, tag = 'internal scratch']
  #allocation2 [shape = 'f32[1,1]{1,0:T(1,128)S(1)}', space=vmem, size = 0x200, scoped, tag = 'scoped memory for tpu_custom_call.1']
  %s0 = inlined_call_operand.hbm [shape: f32[3,8,18], index: 0, kind: input, shape index: {}]
  %s1 = inlined_call_operand.hbm [shape: f32[8,14], index: 1, kind: input, shape index: {}]
  %s2 = inlined_call_operand.hbm [shape: f32[18,256], index: 2, kind: input, shape index: {}]
  %s3 = inlined_call_operand.hbm [shape: f32[14,256], index: 3, kind: input, shape index: {}]
  %s4 = inlined_call_operand.vmem [shape: f32[1,256], index: 4, kind: input, shape index: {}]
  %s5 = inlined_call_operand.hbm [shape: f32[256,256], index: 5, kind: input, shape index: {}]
  %s6 = inlined_call_operand.vmem [shape: f32[1,256], index: 6, kind: input, shape index: {}]
  %s7 = inlined_call_operand.hbm [shape: f32[256,256], index: 7, kind: input, shape index: {}]
  %s8 = inlined_call_operand.vmem [shape: f32[1,256], index: 8, kind: input, shape index: {}]
  %s9 = inlined_call_operand.hbm [shape: f32[256,256], index: 9, kind: input, shape index: {}]
  %s10 = inlined_call_operand.vmem [shape: f32[1,256], index: 10, kind: input, shape index: {}]
  %s11 = inlined_call_operand.vmem [shape: f32[1,256], index: 11, kind: input, shape index: {}]
  %s12 = inlined_call_operand.<no memory space> [shape: f32[1,1], index: 12, kind: input, shape index: {}]
  %s13 = inlined_call_operand.hbm [shape: f32[8,128], index: 13, kind: output, shape index: {}]
  %s14 = sld [smem:[#allocation0]]
  $region90: #{tpu_custom_call.1} parent=0
    _
  %s16 = ssub.s32 1, %s14
  %s17 = scalar_select 0, %s16, %s14
  %v18 = vstv %s12
  %19 = vst [vmem:[#allocation2] sm:$0x1] %v18
  $region1: #{tpu_custom_call.1} parent=0
    #allocation3 [shape = 'u8[12288]{0}', space=vmem, size = 0x3000, scoped, tag = 'input window, operand 0, single buffered']
    #allocation4 [shape = 's32[1]{0}', space=sflag, size = 0x4, scoped, tag = 'scoped memory for tpu_custom_call.1']
    #allocation5 [shape = 's32[1]{0}', space=sflag, size = 0x4, scoped, tag = 'scoped memory for tpu_custom_call.1']
    #allocation6 [shape = 'u8[4096]{0}', space=vmem, size = 0x1000, scoped, tag = 'input window, operand 1, single buffered']
    #allocation7 [shape = 's32[1]{0}', space=sflag, size = 0x4, scoped, tag = 'scoped memory for tpu_custom_call.1']
    #allocation8 [shape = 'u8[24576]{0}', space=vmem, size = 0x6000, scoped, tag = 'input window, operand 2, single buffered']
    #allocation9 [shape = 'u8[16384]{0}', space=vmem, size = 0x4000, scoped, tag = 'input window, operand 3, single buffered']
    #allocation10 [shape = 's32[1]{0}', space=sflag, size = 0x4, scoped, tag = 'scoped memory for tpu_custom_call.1']
    #allocation11 [shape = 'u8[262144]{0}', space=vmem, size = 0x40000, scoped, tag = 'input window, operand 5, single buffered']
    #allocation12 [shape = 'u8[262144]{0}', space=vmem, size = 0x40000, scoped, tag = 'input window, operand 7, single buffered']
    #allocation13 [shape = 's32[1]{0}', space=sflag, size = 0x4, scoped, tag = 'scoped memory for tpu_custom_call.1']
    #allocation14 [shape = 'u8[262144]{0}', space=vmem, size = 0x40000, scoped, tag = 'input window, operand 9, single buffered']
    #allocation15 [shape = 'u8[4096]{0}', space=vmem, size = 0x1000, scoped, tag = 'output window, operand 0, single buffered']
    %20 = vsyncpa [#allocation4], 0
    %21 = vsyncpa [#allocation7], 0
    %22 = vsyncpa [#allocation10], 0
    %23 = vsyncpa [#allocation13], 0
    %24 = vsyncpa [#allocation5], 0
    // Predicated region
    $region2: #{tpu_custom_call.1} parent=1 // pred_check
      _
    $region3: #{tpu_custom_call.1} parent=1 // pred_check_branch
      %26 = sbr.rel (0) target = $region5
    $region4: #{tpu_custom_call.1} parent=1 // pred_region
      %s28 = ssub.s32 384, 384
      %29 = vsyncadd [#allocation4], %s28
      %s30 = sshll.u32 [#allocation3], 4
      %s31 = int_to_ptr.vmem [resolvable:$true] %s30
      %36 = dma.hbm_to_vmem [thread:$0]  %s0, 384, %s31, [#allocation4], 128, 128, 8
    $region5: #{tpu_custom_call.1} parent=1 // pred_fallthru
      _
    // Predicated region
    $region6: #{tpu_custom_call.1} parent=1 // pred_check
      _
    $region7: #{tpu_custom_call.1} parent=1 // pred_check_branch
      %38 = sbr.rel (0) target = $region9
    $region8: #{tpu_custom_call.1} parent=1 // pred_region
      %s40 = ssub.s32 128, 128
      %41 = vsyncadd [#allocation7], %s40
      %s43 = sshll.u32 [#allocation6], 4
      %s44 = int_to_ptr.vmem [resolvable:$true] %s43
      %46 = dma.hbm_to_vmem [thread:$0]  %s1, 128, %s44, [#allocation7]
    $region9: #{tpu_custom_call.1} parent=1 // pred_fallthru
      _
    // Predicated region
    $region10: #{tpu_custom_call.1} parent=1 // pred_check
      _
    $region11: #{tpu_custom_call.1} parent=1 // pred_check_branch
      %48 = sbr.rel (0) target = $region13
    $region12: #{tpu_custom_call.1} parent=1 // pred_region
      %s50 = ssub.s32 768, 768
      %51 = vsyncadd [#allocation7], %s50
      %s52 = sshll.u32 [#allocation8], 4
      %s53 = int_to_ptr.vmem [resolvable:$true] %s52
      %58 = dma.hbm_to_vmem [thread:$0]  %s2, 768, %s53, [#allocation7], 256, 256, 16
    $region13: #{tpu_custom_call.1} parent=1 // pred_fallthru
      _
    // Predicated region
    $region14: #{tpu_custom_call.1} parent=1 // pred_check
      _
    $region15: #{tpu_custom_call.1} parent=1 // pred_check_branch
      %60 = sbr.rel (0) target = $region17
    $region16: #{tpu_custom_call.1} parent=1 // pred_region
      %s62 = ssub.s32 512, 512
      %63 = vsyncadd [#allocation10], %s62
      %s64 = sshll.u32 [#allocation9], 4
      %s65 = int_to_ptr.vmem [resolvable:$true] %s64
      %70 = dma.hbm_to_vmem [thread:$0]  %s3, 512, %s65, [#allocation10], 256, 256, 16
    $region17: #{tpu_custom_call.1} parent=1 // pred_fallthru
      _
    // Predicated region
    $region18: #{tpu_custom_call.1} parent=1 // pred_check
      _
    $region19: #{tpu_custom_call.1} parent=1 // pred_check_branch
      %72 = sbr.rel (0) target = $region21
    $region20: #{tpu_custom_call.1} parent=1 // pred_region
      _
    $region21: #{tpu_custom_call.1} parent=1 // pred_fallthru
      _
    // Predicated region
    $region22: #{tpu_custom_call.1} parent=1 // pred_check
      _
    $region23: #{tpu_custom_call.1} parent=1 // pred_check_branch
      %74 = sbr.rel (0) target = $region25
    $region24: #{tpu_custom_call.1} parent=1 // pred_region
      %s76 = ssub.s32 8192, 8192
      %77 = vsyncadd [#allocation10], %s76
      %s78 = sshll.u32 [#allocation11], 4
      %s79 = int_to_ptr.vmem [resolvable:$true] %s78
      %84 = dma.hbm_to_vmem [thread:$0]  %s5, 8192, %s79, [#allocation10], 256, 256, 16
    $region25: #{tpu_custom_call.1} parent=1 // pred_fallthru
      _
    // Predicated region
    $region26: #{tpu_custom_call.1} parent=1 // pred_check
      _
    $region27: #{tpu_custom_call.1} parent=1 // pred_check_branch
      %86 = sbr.rel (0) target = $region29
    $region28: #{tpu_custom_call.1} parent=1 // pred_region
      _
    $region29: #{tpu_custom_call.1} parent=1 // pred_fallthru
      _
    // Predicated region
    $region30: #{tpu_custom_call.1} parent=1 // pred_check
      _
    $region31: #{tpu_custom_call.1} parent=1 // pred_check_branch
      %88 = sbr.rel (0) target = $region33
    $region32: #{tpu_custom_call.1} parent=1 // pred_region
      %s90 = ssub.s32 8192, 8192
      %91 = vsyncadd [#allocation13], %s90
      %s92 = sshll.u32 [#allocation12], 4
      %s93 = int_to_ptr.vmem [resolvable:$true] %s92
      %98 = dma.hbm_to_vmem [thread:$0]  %s7, 8192, %s93, [#allocation13], 256, 256, 16
    $region33: #{tpu_custom_call.1} parent=1 // pred_fallthru
      _
    // Predicated region
    $region34: #{tpu_custom_call.1} parent=1 // pred_check
      _
    $region35: #{tpu_custom_call.1} parent=1 // pred_check_branch
      %100 = sbr.rel (0) target = $region37
    $region36: #{tpu_custom_call.1} parent=1 // pred_region
      _
    $region37: #{tpu_custom_call.1} parent=1 // pred_fallthru
      _
    // Predicated region
    $region38: #{tpu_custom_call.1} parent=1 // pred_check
      _
    $region39: #{tpu_custom_call.1} parent=1 // pred_check_branch
      %102 = sbr.rel (0) target = $region41
    $region40: #{tpu_custom_call.1} parent=1 // pred_region
      %s104 = ssub.s32 8192, 8192
      %105 = vsyncadd [#allocation13], %s104
      %s106 = sshll.u32 [#allocation14], 4
      %s107 = int_to_ptr.vmem [resolvable:$true] %s106
      %112 = dma.hbm_to_vmem [thread:$0]  %s9, 8192, %s107, [#allocation13], 256, 256, 16
    $region41: #{tpu_custom_call.1} parent=1 // pred_fallthru
      _
    // Predicated region
    $region42: #{tpu_custom_call.1} parent=1 // pred_check
      _
    $region43: #{tpu_custom_call.1} parent=1 // pred_check_branch
      %114 = sbr.rel (0) target = $region45
    $region44: #{tpu_custom_call.1} parent=1 // pred_region
      _
    $region45: #{tpu_custom_call.1} parent=1 // pred_fallthru
      _
    // Predicated region
    $region46: #{tpu_custom_call.1} parent=1 // pred_check
      _
    $region47: #{tpu_custom_call.1} parent=1 // pred_check_branch
      %116 = sbr.rel (0) target = $region49
    $region48: #{tpu_custom_call.1} parent=1 // pred_region
      _
    $region49: #{tpu_custom_call.1} parent=1 // pred_fallthru
      _
    // Predicated region
    $region50: #{tpu_custom_call.1} parent=1 // pred_check
      _
    $region51: #{tpu_custom_call.1} parent=1 // pred_check_branch
      %118 = sbr.rel (0) target = $region53
    $region52: #{tpu_custom_call.1} parent=1 // pred_region
      _
    $region53: #{tpu_custom_call.1} parent=1 // pred_fallthru
      _
    // Predicated region
    $region54: #{tpu_custom_call.1} parent=1 // pred_check
      _
    $region55: #{tpu_custom_call.1} parent=1 // pred_check_branch
      %120 = sbr.rel (0) target = $region57
    $region56: #{tpu_custom_call.1} parent=1 // pred_region
      %121 = dma.done [#allocation4], 384
    $region57: #{tpu_custom_call.1} parent=1 // pred_fallthru
      _
    // Predicated region
    $region58: #{tpu_custom_call.1} parent=1 // pred_check
      _
    $region59: #{tpu_custom_call.1} parent=1 // pred_check_branch
      %123 = sbr.rel (0) target = $region61
    $region60: #{tpu_custom_call.1} parent=1 // pred_region
      %124 = dma.done [#allocation7], 128
    $region61: #{tpu_custom_call.1} parent=1 // pred_fallthru
      _
    // Predicated region
    $region62: #{tpu_custom_call.1} parent=1 // pred_check
      _
    $region63: #{tpu_custom_call.1} parent=1 // pred_check_branch
      %126 = sbr.rel (0) target = $region65
    $region64: #{tpu_custom_call.1} parent=1 // pred_region
      %127 = dma.done [#allocation7], 768
    $region65: #{tpu_custom_call.1} parent=1 // pred_fallthru
      _
    // Predicated region
    $region66: #{tpu_custom_call.1} parent=1 // pred_check
      _
    $region67: #{tpu_custom_call.1} parent=1 // pred_check_branch
      %129 = sbr.rel (0) target = $region69
    $region68: #{tpu_custom_call.1} parent=1 // pred_region
      %130 = dma.done [#allocation10], 512
    $region69: #{tpu_custom_call.1} parent=1 // pred_fallthru
      _
    // Predicated region
    $region70: #{tpu_custom_call.1} parent=1 // pred_check
      _
    $region71: #{tpu_custom_call.1} parent=1 // pred_check_branch
      %132 = sbr.rel (0) target = $region73
    $region72: #{tpu_custom_call.1} parent=1 // pred_region
      %133 = dma.done [#allocation10], 8192
    $region73: #{tpu_custom_call.1} parent=1 // pred_fallthru
      _
    // Predicated region
    $region74: #{tpu_custom_call.1} parent=1 // pred_check
      _
    $region75: #{tpu_custom_call.1} parent=1 // pred_check_branch
      %135 = sbr.rel (0) target = $region77
    $region76: #{tpu_custom_call.1} parent=1 // pred_region
      %136 = dma.done [#allocation13], 8192
    $region77: #{tpu_custom_call.1} parent=1 // pred_fallthru
      _
    // Predicated region
    $region78: #{tpu_custom_call.1} parent=1 // pred_check
      _
    $region79: #{tpu_custom_call.1} parent=1 // pred_check_branch
      %138 = sbr.rel (0) target = $region81
    $region80: #{tpu_custom_call.1} parent=1 // pred_region
      %139 = dma.done [#allocation13], 8192
    $region81: #{tpu_custom_call.1} parent=1 // pred_fallthru
      _
    %v140 = vld [vmem:[#allocation6] sm:$0xff]
    %v141 = vld [vmem:[#allocation9] sm:$0xff]
    %v142 = vld [vmem:[#allocation9 + $0x8] sm:$0xff]
    %v143 = vld [vmem:[#allocation9 + $0x10] sm:$0x3f]
    %v144 = vld [vmem:[#allocation9 + $0x18] sm:$0x3f]
    %v145 = vld [vmem:[%s4] sm:$0x3]
    %v147 = vlaneseq
    %v148 = vshrl.u32 %v147, 7
    %v149 = vsub.s32 0, %v148
    %v150 = vrot.slane %v145, %v149
    %v151 = vlaneseq
    %v152 = vshrl.u32 %v151, 7
    %v153 = vsub.s32 1, %v152
    %v154 = vrot.slane %v145, %v153
    %vm157 = vcmask 113664
    %v159 = vsel %vm157, %v140, 0
    %vm161 = vcmask 1045504
    %v163 = vsel %vm161, %v143, 0
    %v166 = vsel %vm161, %v144, 0
    %168 = vmatprep.subr.mxu0 %v142
    %169 = vmatpush1.msra.mxu0 %v141
    %170 = vmatprep.subr.mxu0 %v166
    %171 = vmatpush1.msra.mxu0 %v163
    %172 = vmatprep.subr.mxu0 0.0
    %173 = vmatpush1.msra.mxu0 0.0
    %174 = vmatprep.subr.mxu0 0.0
    %175 = vmatpush1.msra.mxu0 0.0
    %176 = vmatprep.subr.mxu0 0.0
    %177 = vmatpush1.msra.mxu0 0.0
    %178 = vmatprep.subr.mxu0 0.0
    %179 = vmatpush1.msra.mxu0 0.0
    %180 = vmatprep.subr.mxu0 0.0
    %181 = vmatpush1.msra.mxu0 0.0
    %182 = vmatprep.subr.mxu0 0.0
    %183 = vmatpush1.msra.mxu0 0.0
    %184 = vmatprep.subr.mxu0 0.0
    %185 = vmatpush1.msra.mxu0 0.0
    %186 = vmatprep.subr.mxu0 0.0
    %187 = vmatpush1.msra.mxu0 0.0
    %188 = vmatprep.subr.mxu0 0.0
    %189 = vmatpush1.msra.mxu0 0.0
    %190 = vmatprep.subr.mxu0 0.0
    %191 = vmatpush1.msra.mxu0 0.0
    %192 = vmatprep.subr.mxu0 0.0
    %193 = vmatpush1.msra.mxu0 0.0
    %194 = vmatprep.subr.mxu0 0.0
    %195 = vmatpush1.msra.mxu0 0.0
    %196 = vmatprep.subr.mxu0 0.0
    %197 = vmatpush1.msra.mxu0 0.0
    %198 = vmatprep.subr.mxu0 0.0
    %199 = vmatpush1.msra.mxu0 0.0
    %200 = vmatprep.subr.mxu0 0.0
    %201 = vmatpush1.msra.mxu0 0.0
    %202 = vmatprep.subr.mxu0 0.0
    %203 = vmatpush1.msra.mxu0 0.0
    %204 = vmatprep.subr.mxu0 0.0
    %205 = vmatpush1.msra.mxu0 0.0
    %206 = vmatprep.subr.mxu0 0.0
    %207 = vmatpush1.msra.mxu0 0.0
    %208 = vmatprep.subr.mxu0 0.0
    %209 = vmatpush1.msra.mxu0 0.0
    %210 = vmatprep.subr.mxu0 0.0
    %211 = vmatpush1.msra.mxu0 0.0
    %212 = vmatprep.subr.mxu0 0.0
    %213 = vmatpush1.msra.mxu0 0.0
    %214 = vmatprep.subr.mxu0 0.0
    %215 = vmatpush1.msra.mxu0 0.0
    %216 = vmatprep.subr.mxu0 0.0
    %217 = vmatpush1.msra.mxu0 0.0
    %218 = vmatprep.subr.mxu0 0.0
    %219 = vmatpush1.msra.mxu0 0.0
    %220 = vmatprep.subr.mxu0 0.0
    %221 = vmatpush1.msra.mxu0 0.0
    %222 = vmatprep.subr.mxu0 0.0
    %223 = vmatpush1.msra.mxu0 0.0
    %224 = vmatprep.subr.mxu0 0.0
    %225 = vmatpush1.msra.mxu0 0.0
    %226 = vmatprep.subr.mxu0 0.0
    %227 = vmatpush1.msra.mxu0 0.0
    %228 = vmatprep.subr.mxu0 0.0
    %229 = vmatpush1.msra.mxu0 0.0
    %230 = vmatprep.subr.mxu0 0.0
    %231 = vmatpush1.msra.mxu0 0.0
    %232 = vmatprep.mubr.f32.mxu0 0.0
    %233 = vmatmul.mubr.f32.gmra.mrb[0].mxu0 %v159
    %v234 = vpop.f32.mrb[0].mxu0
    %v235 = vadd.f32 %v150, %v234
    %v236 = vpop.f32.mrb[0].mxu0
    %v237 = vadd.f32 %v154, %v236
    %238 = vdwg.mxu0
    %v239 = vld [vmem:[#allocation3] sm:$0xff]
    %v240 = vld [vmem:[#allocation3 + $0x8] sm:$0xff]
    %v241 = vld [vmem:[#allocation3 + $0x10] sm:$0xff]
    %v242 = vld [vmem:[#allocation8] sm:$0xff]
    %v243 = vld [vmem:[#allocation8 + $0x8] sm:$0xff]
    %v244 = vld [vmem:[#allocation8 + $0x10] sm:$0xff]
    %v245 = vld [vmem:[#allocation8 + $0x18] sm:$0xff]
    %v246 = vld [vmem:[#allocation8 + $0x20] sm:$0x3]
    %v247 = vld [vmem:[#allocation8 + $0x28] sm:$0x3]
    %vm248 = vcmask 146432
    %v250 = vsel %vm248, %v239, 0
    %v253 = vsel %vm248, %v240, 0
    %v256 = vsel %vm248, %v241, 0
    %vm258 = vcmask 1041408
    %v260 = vsel %vm258, %v246, 0
    %v263 = vsel %vm258, %v247, 0
    %265 = vmatprep.subr.mxu0 %v243
    %266 = vmatpush1.msra.mxu0 %v242
    %267 = vmatprep.subr.mxu0 %v245
    %268 = vmatpush1.msra.mxu0 %v244
    %269 = vmatprep.subr.mxu0 %v263
    %270 = vmatpush1.msra.mxu0 %v260
    %271 = vmatprep.subr.mxu0 0.0
    %272 = vmatpush1.msra.mxu0 0.0
    %273 = vmatprep.subr.mxu0 0.0
    %274 = vmatpush1.msra.mxu0 0.0
    %275 = vmatprep.subr.mxu0 0.0
    %276 = vmatpush1.msra.mxu0 0.0
    %277 = vmatprep.subr.mxu0 0.0
    %278 = vmatpush1.msra.mxu0 0.0
    %279 = vmatprep.subr.mxu0 0.0
    %280 = vmatpush1.msra.mxu0 0.0
    %281 = vmatprep.subr.mxu0 0.0
    %282 = vmatpush1.msra.mxu0 0.0
    %283 = vmatprep.subr.mxu0 0.0
    %284 = vmatpush1.msra.mxu0 0.0
    %285 = vmatprep.subr.mxu0 0.0
    %286 = vmatpush1.msra.mxu0 0.0
    %287 = vmatprep.subr.mxu0 0.0
    %288 = vmatpush1.msra.mxu0 0.0
    %289 = vmatprep.subr.mxu0 0.0
    %290 = vmatpush1.msra.mxu0 0.0
    %291 = vmatprep.subr.mxu0 0.0
    %292 = vmatpush1.msra.mxu0 0.0
    %293 = vmatprep.subr.mxu0 0.0
    %294 = vmatpush1.msra.mxu0 0.0
    %295 = vmatprep.subr.mxu0 0.0
    %296 = vmatpush1.msra.mxu0 0.0
    %297 = vmatprep.subr.mxu0 0.0
    %298 = vmatpush1.msra.mxu0 0.0
    %299 = vmatprep.subr.mxu0 0.0
    %300 = vmatpush1.msra.mxu0 0.0
    %301 = vmatprep.subr.mxu0 0.0
    %302 = vmatpush1.msra.mxu0 0.0
    %303 = vmatprep.subr.mxu0 0.0
    %304 = vmatpush1.msra.mxu0 0.0
    %305 = vmatprep.subr.mxu0 0.0
    %306 = vmatpush1.msra.mxu0 0.0
    %307 = vmatprep.subr.mxu0 0.0
    %308 = vmatpush1.msra.mxu0 0.0
    %309 = vmatprep.subr.mxu0 0.0
    %310 = vmatpush1.msra.mxu0 0.0
    %311 = vmatprep.subr.mxu0 0.0
    %312 = vmatpush1.msra.mxu0 0.0
    %313 = vmatprep.subr.mxu0 0.0
    %314 = vmatpush1.msra.mxu0 0.0
    %315 = vmatprep.subr.mxu0 0.0
    %316 = vmatpush1.msra.mxu0 0.0
    %317 = vmatprep.subr.mxu0 0.0
    %318 = vmatpush1.msra.mxu0 0.0
    %319 = vmatprep.subr.mxu0 0.0
    %320 = vmatpush1.msra.mxu0 0.0
    %321 = vmatprep.subr.mxu0 0.0
    %322 = vmatpush1.msra.mxu0 0.0
    %323 = vmatprep.subr.mxu0 0.0
    %324 = vmatpush1.msra.mxu0 0.0
    %325 = vmatprep.subr.mxu0 0.0
    %326 = vmatpush1.msra.mxu0 0.0
    %327 = vmatprep.subr.mxu0 0.0
    %328 = vmatpush1.msra.mxu0 0.0
    %329 = vmatprep.mubr.f32.mxu0 0.0
    %330 = vmatmul.mubr.f32.gmra.mrb[0].mxu0 %v250
    %v331 = vpop.f32.mrb[0].mxu0
    %v332 = vadd.f32 0.0, %v331
    %v333 = vpop.f32.mrb[0].mxu0
    %v334 = vadd.f32 0.0, %v333
    %335 = vmatprep.mubr.f32.mxu0 0.0
    %336 = vmatmul.mubr.f32.gmra.mrb[0].mxu0 %v253
    %v337 = vpop.f32.mrb[0].mxu0
    %v338 = vadd.f32 0.0, %v337
    %v339 = vpop.f32.mrb[0].mxu0
    %v340 = vadd.f32 0.0, %v339
    %341 = vmatprep.mubr.f32.mxu0 0.0
    %342 = vmatmul.mubr.f32.gmra.mrb[0].mxu0 %v256
    %v343 = vpop.f32.mrb[0].mxu0
    %v344 = vadd.f32 0.0, %v343
    %v345 = vpop.f32.mrb[0].mxu0
    %v346 = vadd.f32 0.0, %v345
    %347 = vdwg.mxu0
    %v348 = vadd.f32 %v332, %v235
    %v349 = vadd.f32 %v334, %v237
    %v350 = vadd.f32 %v338, %v235
    %v351 = vadd.f32 %v340, %v237
    %v352 = vadd.f32 %v344, %v235
    %v353 = vadd.f32 %v346, %v237
    %v354 = vmax.f32 %v348, 0.0
    %v355 = vmax.f32 %v349, 0.0
    %v356 = vmax.f32 %v350, 0.0
    %v357 = vmax.f32 %v351, 0.0
    %v358 = vmax.f32 %v352, 0.0
    %v359 = vmax.f32 %v353, 0.0
    %v360 = vld [vmem:[#allocation11] sm:$0xff]
    %v361 = vld [vmem:[#allocation11 + $0x8] sm:$0xff]
    %v362 = vld [vmem:[#allocation11 + $0x10] sm:$0xff]
    %v363 = vld [vmem:[#allocation11 + $0x18] sm:$0xff]
    %v364 = vld [vmem:[#allocation11 + $0x20] sm:$0xff]
    %v365 = vld [vmem:[#allocation11 + $0x28] sm:$0xff]
    %v366 = vld [vmem:[#allocation11 + $0x30] sm:$0xff]
    %v367 = vld [vmem:[#allocation11 + $0x38] sm:$0xff]
    %v368 = vld [vmem:[#allocation11 + $0x40] sm:$0xff]
    %v369 = vld [vmem:[#allocation11 + $0x48] sm:$0xff]
    %v370 = vld [vmem:[#allocation11 + $0x50] sm:$0xff]
    %v371 = vld [vmem:[#allocation11 + $0x58] sm:$0xff]
    %v372 = vld [vmem:[#allocation11 + $0x60] sm:$0xff]
    %v373 = vld [vmem:[#allocation11 + $0x68] sm:$0xff]
    %v374 = vld [vmem:[#allocation11 + $0x70] sm:$0xff]
    %v375 = vld [vmem:[#allocation11 + $0x78] sm:$0xff]
    %v376 = vld [vmem:[#allocation11 + $0x80] sm:$0xff]
    %v377 = vld [vmem:[#allocation11 + $0x88] sm:$0xff]
    %v378 = vld [vmem:[#allocation11 + $0x90] sm:$0xff]
    %v379 = vld [vmem:[#allocation11 + $0x98] sm:$0xff]
    %v380 = vld [vmem:[#allocation11 + $0xa0] sm:$0xff]
    %v381 = vld [vmem:[#allocation11 + $0xa8] sm:$0xff]
    %v382 = vld [vmem:[#allocation11 + $0xb0] sm:$0xff]
    %v383 = vld [vmem:[#allocation11 + $0xb8] sm:$0xff]
    %v384 = vld [vmem:[#allocation11 + $0xc0] sm:$0xff]
    %v385 = vld [vmem:[#allocation11 + $0xc8] sm:$0xff]
    %v386 = vld [vmem:[#allocation11 + $0xd0] sm:$0xff]
    %v387 = vld [vmem:[#allocation11 + $0xd8] sm:$0xff]
    %v388 = vld [vmem:[#allocation11 + $0xe0] sm:$0xff]
    %v389 = vld [vmem:[#allocation11 + $0xe8] sm:$0xff]
    %v390 = vld [vmem:[#allocation11 + $0xf0] sm:$0xff]
    %v391 = vld [vmem:[#allocation11 + $0xf8] sm:$0xff]
    %v392 = vld [vmem:[#allocation11 + $0x100] sm:$0xff]
    %v393 = vld [vmem:[#allocation11 + $0x108] sm:$0xff]
    %v394 = vld [vmem:[#allocation11 + $0x110] sm:$0xff]
    %v395 = vld [vmem:[#allocation11 + $0x118] sm:$0xff]
    %v396 = vld [vmem:[#allocation11 + $0x120] sm:$0xff]
    %v397 = vld [vmem:[#allocation11 + $0x128] sm:$0xff]
    %v398 = vld [vmem:[#allocation11 + $0x130] sm:$0xff]
    %v399 = vld [vmem:[#allocation11 + $0x138] sm:$0xff]
    %v400 = vld [vmem:[#allocation11 + $0x140] sm:$0xff]
    %v401 = vld [vmem:[#allocation11 + $0x148] sm:$0xff]
    %v402 = vld [vmem:[#allocation11 + $0x150] sm:$0xff]
    %v403 = vld [vmem:[#allocation11 + $0x158] sm:$0xff]
    %v404 = vld [vmem:[#allocation11 + $0x160] sm:$0xff]
    %v405 = vld [vmem:[#allocation11 + $0x168] sm:$0xff]
    %v406 = vld [vmem:[#allocation11 + $0x170] sm:$0xff]
    %v407 = vld [vmem:[#allocation11 + $0x178] sm:$0xff]
    %v408 = vld [vmem:[#allocation11 + $0x180] sm:$0xff]
    %v409 = vld [vmem:[#allocation11 + $0x188] sm:$0xff]
    %v410 = vld [vmem:[#allocation11 + $0x190] sm:$0xff]
    %v411 = vld [vmem:[#allocation11 + $0x198] sm:$0xff]
    %v412 = vld [vmem:[#allocation11 + $0x1a0] sm:$0xff]
    %v413 = vld [vmem:[#allocation11 + $0x1a8] sm:$0xff]
    %v414 = vld [vmem:[#allocation11 + $0x1b0] sm:$0xff]
    %v415 = vld [vmem:[#allocation11 + $0x1b8] sm:$0xff]
    %v416 = vld [vmem:[#allocation11 + $0x1c0] sm:$0xff]
    %v417 = vld [vmem:[#allocation11 + $0x1c8] sm:$0xff]
    %v418 = vld [vmem:[#allocation11 + $0x1d0] sm:$0xff]
    %v419 = vld [vmem:[#allocation11 + $0x1d8] sm:$0xff]
    %v420 = vld [vmem:[#allocation11 + $0x1e0] sm:$0xff]
    %v421 = vld [vmem:[#allocation11 + $0x1e8] sm:$0xff]
    %v422 = vld [vmem:[#allocation11 + $0x1f0] sm:$0xff]
    %v423 = vld [vmem:[#allocation11 + $0x1f8] sm:$0xff]
    %v424 = vld [vmem:[%s6] sm:$0x3]
    %v426 = vlaneseq
    %v427 = vshrl.u32 %v426, 7
    %v428 = vsub.s32 0, %v427
    %v429 = vrot.slane %v424, %v428
    %v430 = vlaneseq
    %v431 = vshrl.u32 %v430, 7
    %v432 = vsub.s32 1, %v431
    %v433 = vrot.slane %v424, %v432
    %436 = vmatprep.subr.mxu0 %v361
    %437 = vmatpush1.msra.mxu0 %v360
    %438 = vmatprep.subr.mxu0 %v363
    %439 = vmatpush1.msra.mxu0 %v362
    %440 = vmatprep.subr.mxu0 %v365
    %441 = vmatpush1.msra.mxu0 %v364
    %442 = vmatprep.subr.mxu0 %v367
    %443 = vmatpush1.msra.mxu0 %v366
    %444 = vmatprep.subr.mxu0 %v369
    %445 = vmatpush1.msra.mxu0 %v368
    %446 = vmatprep.subr.mxu0 %v371
    %447 = vmatpush1.msra.mxu0 %v370
    %448 = vmatprep.subr.mxu0 %v373
    %449 = vmatpush1.msra.mxu0 %v372
    %450 = vmatprep.subr.mxu0 %v375
    %451 = vmatpush1.msra.mxu0 %v374
    %452 = vmatprep.subr.mxu0 %v377
    %453 = vmatpush1.msra.mxu0 %v376
    %454 = vmatprep.subr.mxu0 %v379
    %455 = vmatpush1.msra.mxu0 %v378
    %456 = vmatprep.subr.mxu0 %v381
    %457 = vmatpush1.msra.mxu0 %v380
    %458 = vmatprep.subr.mxu0 %v383
    %459 = vmatpush1.msra.mxu0 %v382
    %460 = vmatprep.subr.mxu0 %v385
    %461 = vmatpush1.msra.mxu0 %v384
    %462 = vmatprep.subr.mxu0 %v387
    %463 = vmatpush1.msra.mxu0 %v386
    %464 = vmatprep.subr.mxu0 %v389
    %465 = vmatpush1.msra.mxu0 %v388
    %466 = vmatprep.subr.mxu0 %v391
    %467 = vmatpush1.msra.mxu0 %v390
    %468 = vmatprep.subr.mxu0 %v393
    %469 = vmatpush1.msra.mxu0 %v392
    %470 = vmatprep.subr.mxu0 %v395
    %471 = vmatpush1.msra.mxu0 %v394
    %472 = vmatprep.subr.mxu0 %v397
    %473 = vmatpush1.msra.mxu0 %v396
    %474 = vmatprep.subr.mxu0 %v399
    %475 = vmatpush1.msra.mxu0 %v398
    %476 = vmatprep.subr.mxu0 %v401
    %477 = vmatpush1.msra.mxu0 %v400
    %478 = vmatprep.subr.mxu0 %v403
    %479 = vmatpush1.msra.mxu0 %v402
    %480 = vmatprep.subr.mxu0 %v405
    %481 = vmatpush1.msra.mxu0 %v404
    %482 = vmatprep.subr.mxu0 %v407
    %483 = vmatpush1.msra.mxu0 %v406
    %484 = vmatprep.subr.mxu0 %v409
    %485 = vmatpush1.msra.mxu0 %v408
    %486 = vmatprep.subr.mxu0 %v411
    %487 = vmatpush1.msra.mxu0 %v410
    %488 = vmatprep.subr.mxu0 %v413
    %489 = vmatpush1.msra.mxu0 %v412
    %490 = vmatprep.subr.mxu0 %v415
    %491 = vmatpush1.msra.mxu0 %v414
    %492 = vmatprep.subr.mxu0 %v417
    %493 = vmatpush1.msra.mxu0 %v416
    %494 = vmatprep.subr.mxu0 %v419
    %495 = vmatpush1.msra.mxu0 %v418
    %496 = vmatprep.subr.mxu0 %v421
    %497 = vmatpush1.msra.mxu0 %v420
    %498 = vmatprep.subr.mxu0 %v423
    %499 = vmatpush1.msra.mxu0 %v422
    %500 = vmatprep.mubr.f32.mxu0 %v355
    %501 = vmatmul.mubr.f32.gmra.mrb[0].mxu0 %v354
    %v502 = vpop.f32.mrb[0].mxu0
    %v503 = vadd.f32 %v429, %v502
    %v504 = vpop.f32.mrb[0].mxu0
    %v505 = vadd.f32 %v433, %v504
    %506 = vmatprep.mubr.f32.mxu0 %v357
    %507 = vmatmul.mubr.f32.gmra.mrb[0].mxu0 %v356
    %v508 = vpop.f32.mrb[0].mxu0
    %v509 = vadd.f32 %v429, %v508
    %v510 = vpop.f32.mrb[0].mxu0
    %v511 = vadd.f32 %v433, %v510
    %512 = vmatprep.mubr.f32.mxu0 %v359
    %513 = vmatmul.mubr.f32.gmra.mrb[0].mxu0 %v358
    %v514 = vpop.f32.mrb[0].mxu0
    %v515 = vadd.f32 %v429, %v514
    %v516 = vpop.f32.mrb[0].mxu0
    %v517 = vadd.f32 %v433, %v516
    %518 = vdwg.mxu0
    %v519 = vmax.f32 %v503, 0.0
    %v520 = vmax.f32 %v505, 0.0
    %v521 = vmax.f32 %v509, 0.0
    %v522 = vmax.f32 %v511, 0.0
    %v523 = vmax.f32 %v515, 0.0
    %v524 = vmax.f32 %v517, 0.0
    %v525 = vld [vmem:[#allocation12] sm:$0xff]
    %v526 = vld [vmem:[#allocation12 + $0x8] sm:$0xff]
    %v527 = vld [vmem:[#allocation12 + $0x10] sm:$0xff]
    %v528 = vld [vmem:[#allocation12 + $0x18] sm:$0xff]
    %v529 = vld [vmem:[#allocation12 + $0x20] sm:$0xff]
    %v530 = vld [vmem:[#allocation12 + $0x28] sm:$0xff]
    %v531 = vld [vmem:[#allocation12 + $0x30] sm:$0xff]
    %v532 = vld [vmem:[#allocation12 + $0x38] sm:$0xff]
    %v533 = vld [vmem:[#allocation12 + $0x40] sm:$0xff]
    %v534 = vld [vmem:[#allocation12 + $0x48] sm:$0xff]
    %v535 = vld [vmem:[#allocation12 + $0x50] sm:$0xff]
    %v536 = vld [vmem:[#allocation12 + $0x58] sm:$0xff]
    %v537 = vld [vmem:[#allocation12 + $0x60] sm:$0xff]
    %v538 = vld [vmem:[#allocation12 + $0x68] sm:$0xff]
    %v539 = vld [vmem:[#allocation12 + $0x70] sm:$0xff]
    %v540 = vld [vmem:[#allocation12 + $0x78] sm:$0xff]
    %v541 = vld [vmem:[#allocation12 + $0x80] sm:$0xff]
    %v542 = vld [vmem:[#allocation12 + $0x88] sm:$0xff]
    %v543 = vld [vmem:[#allocation12 + $0x90] sm:$0xff]
    %v544 = vld [vmem:[#allocation12 + $0x98] sm:$0xff]
    %v545 = vld [vmem:[#allocation12 + $0xa0] sm:$0xff]
    %v546 = vld [vmem:[#allocation12 + $0xa8] sm:$0xff]
    %v547 = vld [vmem:[#allocation12 + $0xb0] sm:$0xff]
    %v548 = vld [vmem:[#allocation12 + $0xb8] sm:$0xff]
    %v549 = vld [vmem:[#allocation12 + $0xc0] sm:$0xff]
    %v550 = vld [vmem:[#allocation12 + $0xc8] sm:$0xff]
    %v551 = vld [vmem:[#allocation12 + $0xd0] sm:$0xff]
    %v552 = vld [vmem:[#allocation12 + $0xd8] sm:$0xff]
    %v553 = vld [vmem:[#allocation12 + $0xe0] sm:$0xff]
    %v554 = vld [vmem:[#allocation12 + $0xe8] sm:$0xff]
    %v555 = vld [vmem:[#allocation12 + $0xf0] sm:$0xff]
    %v556 = vld [vmem:[#allocation12 + $0xf8] sm:$0xff]
    %v557 = vld [vmem:[#allocation12 + $0x100] sm:$0xff]
    %v558 = vld [vmem:[#allocation12 + $0x108] sm:$0xff]
    %v559 = vld [vmem:[#allocation12 + $0x110] sm:$0xff]
    %v560 = vld [vmem:[#allocation12 + $0x118] sm:$0xff]
    %v561 = vld [vmem:[#allocation12 + $0x120] sm:$0xff]
    %v562 = vld [vmem:[#allocation12 + $0x128] sm:$0xff]
    %v563 = vld [vmem:[#allocation12 + $0x130] sm:$0xff]
    %v564 = vld [vmem:[#allocation12 + $0x138] sm:$0xff]
    %v565 = vld [vmem:[#allocation12 + $0x140] sm:$0xff]
    %v566 = vld [vmem:[#allocation12 + $0x148] sm:$0xff]
    %v567 = vld [vmem:[#allocation12 + $0x150] sm:$0xff]
    %v568 = vld [vmem:[#allocation12 + $0x158] sm:$0xff]
    %v569 = vld [vmem:[#allocation12 + $0x160] sm:$0xff]
    %v570 = vld [vmem:[#allocation12 + $0x168] sm:$0xff]
    %v571 = vld [vmem:[#allocation12 + $0x170] sm:$0xff]
    %v572 = vld [vmem:[#allocation12 + $0x178] sm:$0xff]
    %v573 = vld [vmem:[#allocation12 + $0x180] sm:$0xff]
    %v574 = vld [vmem:[#allocation12 + $0x188] sm:$0xff]
    %v575 = vld [vmem:[#allocation12 + $0x190] sm:$0xff]
    %v576 = vld [vmem:[#allocation12 + $0x198] sm:$0xff]
    %v577 = vld [vmem:[#allocation12 + $0x1a0] sm:$0xff]
    %v578 = vld [vmem:[#allocation12 + $0x1a8] sm:$0xff]
    %v579 = vld [vmem:[#allocation12 + $0x1b0] sm:$0xff]
    %v580 = vld [vmem:[#allocation12 + $0x1b8] sm:$0xff]
    %v581 = vld [vmem:[#allocation12 + $0x1c0] sm:$0xff]
    %v582 = vld [vmem:[#allocation12 + $0x1c8] sm:$0xff]
    %v583 = vld [vmem:[#allocation12 + $0x1d0] sm:$0xff]
    %v584 = vld [vmem:[#allocation12 + $0x1d8] sm:$0xff]
    %v585 = vld [vmem:[#allocation12 + $0x1e0] sm:$0xff]
    %v586 = vld [vmem:[#allocation12 + $0x1e8] sm:$0xff]
    %v587 = vld [vmem:[#allocation12 + $0x1f0] sm:$0xff]
    %v588 = vld [vmem:[#allocation12 + $0x1f8] sm:$0xff]
    %v589 = vld [vmem:[%s8] sm:$0x3]
    %v591 = vlaneseq
    %v592 = vshrl.u32 %v591, 7
    %v593 = vsub.s32 0, %v592
    %v594 = vrot.slane %v589, %v593
    %v595 = vlaneseq
    %v596 = vshrl.u32 %v595, 7
    %v597 = vsub.s32 1, %v596
    %v598 = vrot.slane %v589, %v597
    %601 = vmatprep.subr.mxu0 %v526
    %602 = vmatpush1.msra.mxu0 %v525
    %603 = vmatprep.subr.mxu0 %v528
    %604 = vmatpush1.msra.mxu0 %v527
    %605 = vmatprep.subr.mxu0 %v530
    %606 = vmatpush1.msra.mxu0 %v529
    %607 = vmatprep.subr.mxu0 %v532
    %608 = vmatpush1.msra.mxu0 %v531
    %609 = vmatprep.subr.mxu0 %v534
    %610 = vmatpush1.msra.mxu0 %v533
    %611 = vmatprep.subr.mxu0 %v536
    %612 = vmatpush1.msra.mxu0 %v535
    %613 = vmatprep.subr.mxu0 %v538
    %614 = vmatpush1.msra.mxu0 %v537
    %615 = vmatprep.subr.mxu0 %v540
    %616 = vmatpush1.msra.mxu0 %v539
    %617 = vmatprep.subr.mxu0 %v542
    %618 = vmatpush1.msra.mxu0 %v541
    %619 = vmatprep.subr.mxu0 %v544
    %620 = vmatpush1.msra.mxu0 %v543
    %621 = vmatprep.subr.mxu0 %v546
    %622 = vmatpush1.msra.mxu0 %v545
    %623 = vmatprep.subr.mxu0 %v548
    %624 = vmatpush1.msra.mxu0 %v547
    %625 = vmatprep.subr.mxu0 %v550
    %626 = vmatpush1.msra.mxu0 %v549
    %627 = vmatprep.subr.mxu0 %v552
    %628 = vmatpush1.msra.mxu0 %v551
    %629 = vmatprep.subr.mxu0 %v554
    %630 = vmatpush1.msra.mxu0 %v553
    %631 = vmatprep.subr.mxu0 %v556
    %632 = vmatpush1.msra.mxu0 %v555
    %633 = vmatprep.subr.mxu0 %v558
    %634 = vmatpush1.msra.mxu0 %v557
    %635 = vmatprep.subr.mxu0 %v560
    %636 = vmatpush1.msra.mxu0 %v559
    %637 = vmatprep.subr.mxu0 %v562
    %638 = vmatpush1.msra.mxu0 %v561
    %639 = vmatprep.subr.mxu0 %v564
    %640 = vmatpush1.msra.mxu0 %v563
    %641 = vmatprep.subr.mxu0 %v566
    %642 = vmatpush1.msra.mxu0 %v565
    %643 = vmatprep.subr.mxu0 %v568
    %644 = vmatpush1.msra.mxu0 %v567
    %645 = vmatprep.subr.mxu0 %v570
    %646 = vmatpush1.msra.mxu0 %v569
    %647 = vmatprep.subr.mxu0 %v572
    %648 = vmatpush1.msra.mxu0 %v571
    %649 = vmatprep.subr.mxu0 %v574
    %650 = vmatpush1.msra.mxu0 %v573
    %651 = vmatprep.subr.mxu0 %v576
    %652 = vmatpush1.msra.mxu0 %v575
    %653 = vmatprep.subr.mxu0 %v578
    %654 = vmatpush1.msra.mxu0 %v577
    %655 = vmatprep.subr.mxu0 %v580
    %656 = vmatpush1.msra.mxu0 %v579
    %657 = vmatprep.subr.mxu0 %v582
    %658 = vmatpush1.msra.mxu0 %v581
    %659 = vmatprep.subr.mxu0 %v584
    %660 = vmatpush1.msra.mxu0 %v583
    %661 = vmatprep.subr.mxu0 %v586
    %662 = vmatpush1.msra.mxu0 %v585
    %663 = vmatprep.subr.mxu0 %v588
    %664 = vmatpush1.msra.mxu0 %v587
    %665 = vmatprep.mubr.f32.mxu0 %v520
    %666 = vmatmul.mubr.f32.gmra.mrb[0].mxu0 %v519
    %v667 = vpop.f32.mrb[0].mxu0
    %v668 = vadd.f32 %v594, %v667
    %v669 = vpop.f32.mrb[0].mxu0
    %v670 = vadd.f32 %v598, %v669
    %671 = vmatprep.mubr.f32.mxu0 %v522
    %672 = vmatmul.mubr.f32.gmra.mrb[0].mxu0 %v521
    %v673 = vpop.f32.mrb[0].mxu0
    %v674 = vadd.f32 %v594, %v673
    %v675 = vpop.f32.mrb[0].mxu0
    %v676 = vadd.f32 %v598, %v675
    %677 = vmatprep.mubr.f32.mxu0 %v524
    %678 = vmatmul.mubr.f32.gmra.mrb[0].mxu0 %v523
    %v679 = vpop.f32.mrb[0].mxu0
    %v680 = vadd.f32 %v594, %v679
    %v681 = vpop.f32.mrb[0].mxu0
    %v682 = vadd.f32 %v598, %v681
    %683 = vdwg.mxu0
    %v684 = vmax.f32 %v668, 0.0
    %v685 = vmax.f32 %v670, 0.0
    %v686 = vmax.f32 %v674, 0.0
    %v687 = vmax.f32 %v676, 0.0
    %v688 = vmax.f32 %v680, 0.0
    %v689 = vmax.f32 %v682, 0.0
    %v690 = vadd.f32 %v684, %v686
    %v691 = vadd.f32 %v690, %v688
    %v692 = vadd.f32 %v685, %v687
    %v693 = vadd.f32 %v692, %v689
    %v694 = vmul.f32 %v691, 0.33333334
    %v695 = vmul.f32 %v693, 0.33333334
    %v696 = vld [vmem:[#allocation14] sm:$0xff]
    %v697 = vld [vmem:[#allocation14 + $0x8] sm:$0xff]
    %v698 = vld [vmem:[#allocation14 + $0x10] sm:$0xff]
    %v699 = vld [vmem:[#allocation14 + $0x18] sm:$0xff]
    %v700 = vld [vmem:[#allocation14 + $0x20] sm:$0xff]
    %v701 = vld [vmem:[#allocation14 + $0x28] sm:$0xff]
    %v702 = vld [vmem:[#allocation14 + $0x30] sm:$0xff]
    %v703 = vld [vmem:[#allocation14 + $0x38] sm:$0xff]
    %v704 = vld [vmem:[#allocation14 + $0x40] sm:$0xff]
    %v705 = vld [vmem:[#allocation14 + $0x48] sm:$0xff]
    %v706 = vld [vmem:[#allocation14 + $0x50] sm:$0xff]
    %v707 = vld [vmem:[#allocation14 + $0x58] sm:$0xff]
    %v708 = vld [vmem:[#allocation14 + $0x60] sm:$0xff]
    %v709 = vld [vmem:[#allocation14 + $0x68] sm:$0xff]
    %v710 = vld [vmem:[#allocation14 + $0x70] sm:$0xff]
    %v711 = vld [vmem:[#allocation14 + $0x78] sm:$0xff]
    %v712 = vld [vmem:[#allocation14 + $0x80] sm:$0xff]
    %v713 = vld [vmem:[#allocation14 + $0x88] sm:$0xff]
    %v714 = vld [vmem:[#allocation14 + $0x90] sm:$0xff]
    %v715 = vld [vmem:[#allocation14 + $0x98] sm:$0xff]
    %v716 = vld [vmem:[#allocation14 + $0xa0] sm:$0xff]
    %v717 = vld [vmem:[#allocation14 + $0xa8] sm:$0xff]
    %v718 = vld [vmem:[#allocation14 + $0xb0] sm:$0xff]
    %v719 = vld [vmem:[#allocation14 + $0xb8] sm:$0xff]
    %v720 = vld [vmem:[#allocation14 + $0xc0] sm:$0xff]
    %v721 = vld [vmem:[#allocation14 + $0xc8] sm:$0xff]
    %v722 = vld [vmem:[#allocation14 + $0xd0] sm:$0xff]
    %v723 = vld [vmem:[#allocation14 + $0xd8] sm:$0xff]
    %v724 = vld [vmem:[#allocation14 + $0xe0] sm:$0xff]
    %v725 = vld [vmem:[#allocation14 + $0xe8] sm:$0xff]
    %v726 = vld [vmem:[#allocation14 + $0xf0] sm:$0xff]
    %v727 = vld [vmem:[#allocation14 + $0xf8] sm:$0xff]
    %v728 = vld [vmem:[#allocation14 + $0x100] sm:$0xff]
    %v729 = vld [vmem:[#allocation14 + $0x108] sm:$0xff]
    %v730 = vld [vmem:[#allocation14 + $0x110] sm:$0xff]
    %v731 = vld [vmem:[#allocation14 + $0x118] sm:$0xff]
    %v732 = vld [vmem:[#allocation14 + $0x120] sm:$0xff]
    %v733 = vld [vmem:[#allocation14 + $0x128] sm:$0xff]
    %v734 = vld [vmem:[#allocation14 + $0x130] sm:$0xff]
    %v735 = vld [vmem:[#allocation14 + $0x138] sm:$0xff]
    %v736 = vld [vmem:[#allocation14 + $0x140] sm:$0xff]
    %v737 = vld [vmem:[#allocation14 + $0x148] sm:$0xff]
    %v738 = vld [vmem:[#allocation14 + $0x150] sm:$0xff]
    %v739 = vld [vmem:[#allocation14 + $0x158] sm:$0xff]
    %v740 = vld [vmem:[#allocation14 + $0x160] sm:$0xff]
    %v741 = vld [vmem:[#allocation14 + $0x168] sm:$0xff]
    %v742 = vld [vmem:[#allocation14 + $0x170] sm:$0xff]
    %v743 = vld [vmem:[#allocation14 + $0x178] sm:$0xff]
    %v744 = vld [vmem:[#allocation14 + $0x180] sm:$0xff]
    %v745 = vld [vmem:[#allocation14 + $0x188] sm:$0xff]
    %v746 = vld [vmem:[#allocation14 + $0x190] sm:$0xff]
    %v747 = vld [vmem:[#allocation14 + $0x198] sm:$0xff]
    %v748 = vld [vmem:[#allocation14 + $0x1a0] sm:$0xff]
    %v749 = vld [vmem:[#allocation14 + $0x1a8] sm:$0xff]
    %v750 = vld [vmem:[#allocation14 + $0x1b0] sm:$0xff]
    %v751 = vld [vmem:[#allocation14 + $0x1b8] sm:$0xff]
    %v752 = vld [vmem:[#allocation14 + $0x1c0] sm:$0xff]
    %v753 = vld [vmem:[#allocation14 + $0x1c8] sm:$0xff]
    %v754 = vld [vmem:[#allocation14 + $0x1d0] sm:$0xff]
    %v755 = vld [vmem:[#allocation14 + $0x1d8] sm:$0xff]
    %v756 = vld [vmem:[#allocation14 + $0x1e0] sm:$0xff]
    %v757 = vld [vmem:[#allocation14 + $0x1e8] sm:$0xff]
    %v758 = vld [vmem:[#allocation14 + $0x1f0] sm:$0xff]
    %v759 = vld [vmem:[#allocation14 + $0x1f8] sm:$0xff]
    %v760 = vld [vmem:[%s10] sm:$0x3]
    %v762 = vlaneseq
    %v763 = vshrl.u32 %v762, 7
    %v764 = vsub.s32 0, %v763
    %v765 = vrot.slane %v760, %v764
    %v766 = vlaneseq
    %v767 = vshrl.u32 %v766, 7
    %v768 = vsub.s32 1, %v767
    %v769 = vrot.slane %v760, %v768
    %772 = vmatprep.subr.mxu0 %v697
    %773 = vmatpush1.msra.mxu0 %v696
    %774 = vmatprep.subr.mxu0 %v699
    %775 = vmatpush1.msra.mxu0 %v698
    %776 = vmatprep.subr.mxu0 %v701
    %777 = vmatpush1.msra.mxu0 %v700
    %778 = vmatprep.subr.mxu0 %v703
    %779 = vmatpush1.msra.mxu0 %v702
    %780 = vmatprep.subr.mxu0 %v705
    %781 = vmatpush1.msra.mxu0 %v704
    %782 = vmatprep.subr.mxu0 %v707
    %783 = vmatpush1.msra.mxu0 %v706
    %784 = vmatprep.subr.mxu0 %v709
    %785 = vmatpush1.msra.mxu0 %v708
    %786 = vmatprep.subr.mxu0 %v711
    %787 = vmatpush1.msra.mxu0 %v710
    %788 = vmatprep.subr.mxu0 %v713
    %789 = vmatpush1.msra.mxu0 %v712
    %790 = vmatprep.subr.mxu0 %v715
    %791 = vmatpush1.msra.mxu0 %v714
    %792 = vmatprep.subr.mxu0 %v717
    %793 = vmatpush1.msra.mxu0 %v716
    %794 = vmatprep.subr.mxu0 %v719
    %795 = vmatpush1.msra.mxu0 %v718
    %796 = vmatprep.subr.mxu0 %v721
    %797 = vmatpush1.msra.mxu0 %v720
    %798 = vmatprep.subr.mxu0 %v723
    %799 = vmatpush1.msra.mxu0 %v722
    %800 = vmatprep.subr.mxu0 %v725
    %801 = vmatpush1.msra.mxu0 %v724
    %802 = vmatprep.subr.mxu0 %v727
    %803 = vmatpush1.msra.mxu0 %v726
    %804 = vmatprep.subr.mxu0 %v729
    %805 = vmatpush1.msra.mxu0 %v728
    %806 = vmatprep.subr.mxu0 %v731
    %807 = vmatpush1.msra.mxu0 %v730
    %808 = vmatprep.subr.mxu0 %v733
    %809 = vmatpush1.msra.mxu0 %v732
    %810 = vmatprep.subr.mxu0 %v735
    %811 = vmatpush1.msra.mxu0 %v734
    %812 = vmatprep.subr.mxu0 %v737
    %813 = vmatpush1.msra.mxu0 %v736
    %814 = vmatprep.subr.mxu0 %v739
    %815 = vmatpush1.msra.mxu0 %v738
    %816 = vmatprep.subr.mxu0 %v741
    %817 = vmatpush1.msra.mxu0 %v740
    %818 = vmatprep.subr.mxu0 %v743
    %819 = vmatpush1.msra.mxu0 %v742
    %820 = vmatprep.subr.mxu0 %v745
    %821 = vmatpush1.msra.mxu0 %v744
    %822 = vmatprep.subr.mxu0 %v747
    %823 = vmatpush1.msra.mxu0 %v746
    %824 = vmatprep.subr.mxu0 %v749
    %825 = vmatpush1.msra.mxu0 %v748
    %826 = vmatprep.subr.mxu0 %v751
    %827 = vmatpush1.msra.mxu0 %v750
    %828 = vmatprep.subr.mxu0 %v753
    %829 = vmatpush1.msra.mxu0 %v752
    %830 = vmatprep.subr.mxu0 %v755
    %831 = vmatpush1.msra.mxu0 %v754
    %832 = vmatprep.subr.mxu0 %v757
    %833 = vmatpush1.msra.mxu0 %v756
    %834 = vmatprep.subr.mxu0 %v759
    %835 = vmatpush1.msra.mxu0 %v758
    %836 = vmatprep.mubr.f32.mxu0 %v695
    %837 = vmatmul.mubr.f32.gmra.mrb[0].mxu0 %v694
    %v838 = vpop.f32.mrb[0].mxu0
    %v839 = vadd.f32 %v765, %v838
    %v840 = vpop.f32.mrb[0].mxu0
    %v841 = vadd.f32 %v769, %v840
    %842 = vdwg.mxu0
    %v843 = vmax.f32 %v839, 0.0
    %v844 = vmax.f32 %v841, 0.0
    %v845 = vld [vmem:[%s11] sm:$0x3]
    %v847 = vlaneseq
    %v848 = vshrl.u32 %v847, 7
    %v849 = vsub.s32 0, %v848
    %v850 = vrot.slane %v845, %v849
    %v851 = vlaneseq
    %v852 = vshrl.u32 %v851, 7
    %v853 = vsub.s32 1, %v852
    %v854 = vrot.slane %v845, %v853
    %v857 = vmul.f32 %v843, %v850
    %v858 = vmul.f32 %v844, %v854
    %v859 = vadd.f32 %v857, %v858
    %860 = vadd.xlane.f32.xlu0 %v859
    %v861 = vpop.xlane.xlu0 %860
    %v862 = vld [vmem:[#allocation2] sm:$0x1]
    %v864 = vlaneseq
    %v865 = vshrl.u32 %v864, 7
    %v866 = vsub.s32 0, %v865
    %v867 = vrot.slane %v862, %v866
    %v869 = vadd.f32 %v861, %v867
    %v870 = vlaneseq
    %v871 = vand.u32 %v870, 127
    %vm872 = vcmp.eq.s32.totalorder %v871, 0
    %874 = vset.pattern.permute.xlu0 0
    %875 = vperm.xlu0 %874, %v869
    %v876 = vpop.permute.xlu0 %875
    %v878 = vsel %vm872, %v876, 0.0
    %879 = vst [vmem:[#allocation15] sm:$0xff] %v878
    // Predicated region
    $region82: #{tpu_custom_call.1} parent=1 // pred_check
      _
    $region83: #{tpu_custom_call.1} parent=1 // pred_check_branch
      %881 = sbr.rel (0) target = $region85
    $region84: #{tpu_custom_call.1} parent=1 // pred_region
      %s883 = ssub.s32 128, 128
      %884 = vsyncadd [#allocation5], %s883
      %s886 = sshll.u32 [#allocation15], 4
      %s887 = int_to_ptr.vmem [resolvable:$true] %s886
      %889 = dma.vmem_to_hbm [thread:$0]  %s887, 128, %s13, [#allocation5]
    $region85: #{tpu_custom_call.1} parent=1 // pred_fallthru
      _
    // Predicated region
    $region86: #{tpu_custom_call.1} parent=1 // pred_check
      _
    $region87: #{tpu_custom_call.1} parent=1 // pred_check_branch
      %891 = sbr.rel (0) target = $region89
    $region88: #{tpu_custom_call.1} parent=1 // pred_region
      %892 = dma.done [#allocation5], 128
    $region89: #{tpu_custom_call.1} parent=1 // pred_fallthru
      _
    %893 = vsyncpa [#allocation4], 1
    %894 = vsyncpa [#allocation7], 1
    %895 = vsyncpa [#allocation10], 1
    %896 = vsyncpa [#allocation13], 1
    %897 = vsyncpa [#allocation5], 1

</llo_original>
